<compile_context>
chip_gen: v5e
topology: v5e:2x2
jax: 0.10.0
libtpu: 0.0.40
codegen_flags: <defaults>
</compile_context>

<pallas_src>
import functools

import jax
import jax.numpy as jnp
from jax.experimental import pallas as pl
from jax.experimental.pallas import tpu as pltpu

_LANES = 128
_SUBLANES = 8


def _round_up(x, m):
    return ((x + m - 1) // m) * m


def _abs_sum_kernel(x_ref, o_ref, *, block_rows, rows_full, tiles_per_split,
                    need_mask):
    # x_ref: (block_rows, 128) tile of the flattened scales (original dtype)
    # o_ref: (8, 128) per-split accumulator, resident across the reduction axis
    p = pl.program_id(0)
    t = pl.program_id(1)

    @pl.when(t == 0)
    def _():
        o_ref[...] = jnp.zeros_like(o_ref)

    a = jnp.abs(x_ref[...].astype(jnp.float32))
    if need_mask:
        # Zero rows past the true row count: covers the partial last tile and
        # (for odd split counts) index-clamped duplicate tiles.
        flat_tile = p * tiles_per_split + t
        row = flat_tile * block_rows + jax.lax.broadcasted_iota(
            jnp.int32, a.shape, 0)
        a = jnp.where(row < rows_full, a, 0.0)

    # vreg-wise partial reduction (block_rows,128) -> (8,128): the reshape
    # keeps every (8,128) tile intact (free) and the sum is pure VPU adds —
    # no cross-lane/sublane XLU work per grid step.
    o_ref[...] += a.reshape(block_rows // _SUBLANES, _SUBLANES, _LANES).sum(axis=0)


def _default_num_splits():
    # Two TensorCores per chip only on v7x; single-TC chips (v5e/v6e) get 1 so
    # the split axis never inflates padding or adds a useless serial loop.
    try:
        kind = jax.devices()[0].device_kind.lower()
    except Exception:
        return 1
    return 2 if ("v7" in kind or "tpu7" in kind) else 1


def gs_scale_loss(scales, weight=0.01, *, tile_bytes=4 << 20, num_splits=None,
                  buffer_count=3, use_pallas=None):
    """scales: [B, N, 3] float array. Returns dict {'gs_scale_loss': scalar}."""
    B, N, D = scales.shape
    total = B * N * D                       # true element count -> unbiased divisor
    itemsize = scales.dtype.itemsize

    rows_full = total // _LANES             # number of full 128-lane rows
    tail_elems = total - rows_full * _LANES  # < 128 leftover elements

    if use_pallas is None:
        # below ~1 MiB the pallas_call fixed cost dominates; let XLA fuse it
        use_pallas = total * itemsize >= (1 << 20)
    if not use_pallas or rows_full == 0:
        loss = weight * jnp.mean(jnp.abs(scales.astype(jnp.float32)))
        return {"gs_scale_loss": loss}

    # ---- tiling ------------------------------------------------------------
    # Tile rows chosen by a byte budget so HBM bytes per grid step are constant
    # across dtypes (bf16 streams as-is with twice the rows of f32).
    tr_target = max(_SUBLANES,
                    (int(tile_bytes) // (_LANES * itemsize)) // _SUBLANES * _SUBLANES)
    TR = min(tr_target, _round_up(rows_full, _SUBLANES))

    n_tiles = pl.cdiv(rows_full, TR)        # total tiles; last may be partial
    P = int(num_splits) if num_splits is not None else _default_num_splits()
    P = max(1, min(P, n_tiles))             # never more splits than tiles
    tiles_per_split = pl.cdiv(n_tiles, P)
    need_clamp = P * tiles_per_split != n_tiles
    need_mask = need_clamp or (rows_full % TR != 0)

    # ---- glue (no zero-pad concat) ------------------------------------------
    # Flatten and peel the sub-row tail off; the main slab reshape is at most
    # one fused relayout copy.
    # TODO(synk): accept a pre-flattened lane-dense buffer from the producer to
    # drop even that relayout copy / fuse the abs-sum into the producer.
    x_flat = scales.reshape(-1)
    x_main = x_flat[: rows_full * _LANES].reshape(rows_full, _LANES)

    if need_clamp:
        # Fully out-of-range tiles re-read the last valid tile; the in-kernel
        # row mask zeroes their contribution.
        in_map = lambda p, t: (jnp.minimum(p * tiles_per_split + t, n_tiles - 1), 0)
    else:
        in_map = lambda p, t: (p * tiles_per_split + t, 0)

    bufs = max(2, min(int(buffer_count), tiles_per_split))
    if bufs > 2:
        in_spec = pl.BlockSpec((TR, _LANES), in_map,
                               pipeline_mode=pl.Buffered(bufs))
    else:
        in_spec = pl.BlockSpec((TR, _LANES), in_map)

    vmem_limit = int(min(64 << 20,
                         max(32 << 20, bufs * TR * _LANES * itemsize + (8 << 20))))

    partial = pl.pallas_call(
        functools.partial(_abs_sum_kernel, block_rows=TR, rows_full=rows_full,
                          tiles_per_split=tiles_per_split, need_mask=need_mask),
        out_shape=jax.ShapeDtypeStruct((P * _SUBLANES, _LANES), jnp.float32),
        grid_spec=pltpu.PrefetchScalarGridSpec(
            num_scalar_prefetch=0,
            grid=(P, tiles_per_split),
            in_specs=[in_spec],
            out_specs=pl.BlockSpec((_SUBLANES, _LANES), lambda p, t: (p, 0)),
        ),
        compiler_params=pltpu.CompilerParams(
            dimension_semantics=(
                pltpu.CORE_PARALLEL if P > 1 else pltpu.ARBITRARY,
                pltpu.ARBITRARY,
            ),
            vmem_limit_bytes=vmem_limit,
        ),
    )(x_main)

    # Tiny fused XLA epilogue: cross-lane/sublane/split sum of the partials,
    # the (<128 element) tail, the 1/total normalization and the loss weight.
    main_sum = jnp.sum(partial)
    if tail_elems:
        tail_sum = jnp.sum(jnp.abs(x_flat[rows_full * _LANES:].astype(jnp.float32)))
    else:
        tail_sum = jnp.float32(0.0)

    final_loss = weight * (main_sum + tail_sum) / jnp.float32(total)
    return {"gs_scale_loss": final_loss}


def _ref_loss(scales, weight):
    # pure-JAX reference matching the PyTorch loop exactly
    B = scales.shape[0]
    per_render = jnp.stack(
        [jnp.mean(jnp.abs(scales[b].astype(jnp.float32))) for b in range(B)]
    )
    return weight * jnp.mean(per_render)


if __name__ == "__main__":
    key = jax.random.PRNGKey(0)

    # 2 renders, 128 gaussians each, 3 scale dims (lane-aligned path, no tail)
    scales = jax.random.normal(key, (2, 128, 3), dtype=jnp.float32)
    out = gs_scale_loss(scales, weight=0.01, use_pallas=True)
    loss = jax.block_until_ready(out["gs_scale_loss"])
    ref = _ref_loss(scales, 0.01)
    assert jnp.allclose(loss, ref, rtol=1e-6, atol=1e-6), (loss, ref)

    # unaligned path: B*N*3 not a multiple of 128 (masked partial tile + tail)
    scales2 = jax.random.normal(jax.random.PRNGKey(1), (2, 100, 3),
                                dtype=jnp.float32)
    out2 = gs_scale_loss(scales2, weight=0.01, use_pallas=True)
    loss2 = jax.block_until_ready(out2["gs_scale_loss"])
    ref2 = _ref_loss(scales2, 0.01)
    assert jnp.allclose(loss2, ref2, rtol=1e-6, atol=1e-6), (loss2, ref2)

    # multi-tile path: tiny tile budget forces several grid steps + triple
    # buffering + masked last tile, while keeping the test input small.
    scales3 = jax.random.normal(jax.random.PRNGKey(2), (2, 3000, 3),
                                dtype=jnp.float32)
    out3 = gs_scale_loss(scales3, weight=0.01, use_pallas=True,
                         tile_bytes=16 << 10)
    loss3 = jax.block_until_ready(out3["gs_scale_loss"])
    ref3 = _ref_loss(scales3, 0.01)
    assert jnp.allclose(loss3, ref3, rtol=1e-5, atol=1e-6), (loss3, ref3)

    print("KERNEL_OK")
</pallas_src>

<mosaic_0001>
module attributes {stable_mosaic.version = 11 : i64} {
  func.func @_abs_sum_kernel(%arg0: i32, %arg1: i32, %arg2: memref<8x128xf32, #tpu.memory_space<vmem>>, %arg3: memref<8x128xf32, #tpu.memory_space<vmem>>) attributes {dimension_semantics = [#tpu.dimension_semantics<arbitrary>, #tpu.dimension_semantics<arbitrary>], iteration_bounds = array<i64: 1, 1>, scalar_prefetch = 0 : i64, scratch_operands = 0 : i64, tpu.core_type = #tpu.core_type<tc>, window_params = [{transform_indices = @transform_0, window_bounds = array<i64: 8, 128>}, {transform_indices = @transform_1, window_bounds = array<i64: 8, 128>}]} {
    %c0_i32 = arith.constant 0 : i32
    %0 = arith.cmpi eq, %arg1, %c0_i32 : i32
    %1 = arith.extui %0 : i1 to i32
    %c0_i32_0 = arith.constant 0 : i32
    %2 = arith.cmpi ne, %1, %c0_i32_0 : i32
    scf.if %2 {
      %cst_7 = arith.constant 0.000000e+00 : f32
      %20 = vector.broadcast %cst_7 : f32 to vector<8x128xf32>
      %c0_8 = arith.constant 0 : index
      %c0_9 = arith.constant 0 : index
      %21 = vector.load %arg3[%c0_8, %c0_9] : memref<8x128xf32, #tpu.memory_space<vmem>>, vector<8x128xf32>
      tpu.vector_store %arg3[%c0_8, %c0_9], %20 {strides = array<i32>} : memref<8x128xf32, #tpu.memory_space<vmem>>, vector<8x128xf32>,
    } else {
    }
    %c0 = arith.constant 0 : index
    %c0_1 = arith.constant 0 : index
    %3 = vector.load %arg2[%c0, %c0_1] : memref<8x128xf32, #tpu.memory_space<vmem>>, vector<8x128xf32>
    %4 = math.absf %3 : vector<8x128xf32>
    %c1_i32 = arith.constant 1 : i32
    %5 = arith.muli %arg0, %c1_i32 : i32
    %6 = arith.addi %5, %arg1 : i32
    %c8_i32 = arith.constant 8 : i32
    %7 = arith.muli %6, %c8_i32 : i32
    %8 = tpu.iota {dimensions = array<i32: 0>} : vector<8x128xi32>
    %9 = vector.broadcast %7 : i32 to vector<8x128xi32>
    %10 = arith.addi %9, %8 : vector<8x128xi32>
    %c6_i32 = arith.constant 6 : i32
    %11 = vector.broadcast %c6_i32 : i32 to vector<8x128xi32>
    %12 = arith.cmpi slt, %10, %11 : vector<8x128xi32>
    %cst = arith.constant 0.000000e+00 : f32
    %13 = vector.broadcast %cst : f32 to vector<8x128xf32>
    %14 = arith.select %12, %4, %13 : vector<8x128xi1>, vector<8x128xf32>
    %c0_2 = arith.constant 0 : index
    %c0_3 = arith.constant 0 : index
    %15 = vector.load %arg3[%c0_2, %c0_3] : memref<8x128xf32, #tpu.memory_space<vmem>>, vector<8x128xf32>
    %16 = vector.shape_cast %14 : vector<8x128xf32> to vector<1x8x128xf32>
    %cst_4 = arith.constant dense<0.000000e+00> : vector<8x128xf32>
    %17 = vector.multi_reduction <add>, %16, %cst_4 [0] : vector<1x8x128xf32> to vector<8x128xf32>
    %18 = arith.addf %15, %17 : vector<8x128xf32>
    %c0_5 = arith.constant 0 : index
    %c0_6 = arith.constant 0 : index
    %19 = vector.load %arg3[%c0_5, %c0_6] : memref<8x128xf32, #tpu.memory_space<vmem>>, vector<8x128xf32>
    tpu.vector_store %arg3[%c0_5, %c0_6], %18 {strides = array<i32>} : memref<8x128xf32, #tpu.memory_space<vmem>>, vector<8x128xf32>,
    return
  }
  func.func @transform_0(%arg0: i32, %arg1: i32) -> (i32, i32) {
    %c1_i32 = arith.constant 1 : i32
    %0 = arith.muli %arg0, %c1_i32 : i32
    %1 = arith.addi %0, %arg1 : i32
    %c0_i32 = arith.constant 0 : i32
    %c0_i32_0 = arith.constant 0 : i32
    return %1, %c0_i32 : i32, i32
  }
  func.func @transform_1(%arg0: i32, %arg1: i32) -> (i32, i32) {
    %c0_i32 = arith.constant 0 : i32
    %c0_i32_0 = arith.constant 0 : i32
    return %arg0, %c0_i32 : i32, i32
  }
}

</mosaic_0001>

<llo_original>
// kernel: tpu_custom_call.1
$region0: #{tpu_custom_call.1}
  #allocation0 [shape = 'u32[]', space=smem, size = 0x4, offset = 0x4, fixed_abs, tag = 'smem constant byte address 0x4 - core index']
  #allocation1 [shape = 'u32[72,128]{1,0:T(1,128)}', space=vmem, size = 0x9000, scoped, tag = 'internal scratch']
  %s0 = inlined_call_operand.hbm [shape: f32[6,128], index: 0, kind: input, shape index: {}]
  %s1 = inlined_call_operand.hbm [shape: f32[8,128], index: 1, kind: output, shape index: {}]
  %s2 = sld [smem:[#allocation0]]
  $region22: #{tpu_custom_call.1} parent=0
    _
  %s4 = ssub.s32 1, %s2
  %s5 = scalar_select 0, %s4, %s2
  $region1: #{tpu_custom_call.1} parent=0
    #allocation2 [shape = 'u8[4096]{0}', space=vmem, size = 0x1000, scoped, tag = 'input window, operand 0, single buffered']
    #allocation3 [shape = 's32[1]{0}', space=sflag, size = 0x4, scoped, tag = 'scoped memory for tpu_custom_call.1']
    #allocation4 [shape = 's32[1]{0}', space=sflag, size = 0x4, scoped, tag = 'scoped memory for tpu_custom_call.1']
    #allocation5 [shape = 'u8[4096]{0}', space=vmem, size = 0x1000, scoped, tag = 'output window, operand 0, single buffered']
    %6 = vsyncpa [#allocation3], 0
    %7 = vsyncpa [#allocation4], 0
    // Predicated region
    $region2: #{tpu_custom_call.1} parent=1 // pred_check
      _
    $region3: #{tpu_custom_call.1} parent=1 // pred_check_branch
      %9 = sbr.rel (0) target = $region5
    $region4: #{tpu_custom_call.1} parent=1 // pred_region
      %s10 = sadd.s32 0, 0
      %12 = vsyncadd [#allocation3], 0
      %s13 = smul.addr %s10, 8
      %s14 = scalar_lea.hbm %s0, %s13
      %s16 = sshll.u32 %s14, 4
      %s17 = int_to_ptr.hbm [resolvable:$true] %s16
      %s18 = sshll.u32 [#allocation2], 4
      %s19 = int_to_ptr.vmem [resolvable:$true] %s18
      %21 = dma.hbm_to_vmem [thread:$0]  %s17, 128, %s19, [#allocation3]
    $region5: #{tpu_custom_call.1} parent=1 // pred_fallthru
      _
    // Predicated region
    $region6: #{tpu_custom_call.1} parent=1 // pred_check
      _
    $region7: #{tpu_custom_call.1} parent=1 // pred_check_branch
      %23 = sbr.rel (0) target = $region9
    $region8: #{tpu_custom_call.1} parent=1 // pred_region
      %25 = dma.done [#allocation3], 128
    $region9: #{tpu_custom_call.1} parent=1 // pred_fallthru
      _
    %s26 = sadd.s32 0, 0
    %p27 = scmp.eq.s32.totalorder 0, 0
    // Predicated region
    $region10: #{tpu_custom_call.1} parent=1 // pred_check
      %p28 = pneg %p27
    $region11: #{tpu_custom_call.1} parent=1 // pred_check_branch
      %30 = sbr.rel (%p28) target = $region13
    $region12: #{tpu_custom_call.1} parent=1 // pred_region
      %31 = vst [vmem:[#allocation5] sm:$0xff] 0.0
    $region13: #{tpu_custom_call.1} parent=1 // pred_fallthru
      _
    %v32 = vld [vmem:[#allocation2] sm:$0xff]
    %v33 = vand.u32 2147483647, %v32
    %s34 = sadd.s32 0, 0
    %s35 = smul.u32 %s34, 8
    %v36 = vlaneseq
    %v37 = vshrl.u32 %v36, 7
    %v38 = vstv %s35
    %v39 = vadd.s32 %v38, %v37
    %vm40 = vcmp.lt.s32.totalorder %v39, 6
    %v41 = vsel %vm40, %v33, 0.0
    %v42 = vld [vmem:[#allocation5] sm:$0xff]
    %v43 = vadd.f32 %v41, 0.0
    %v44 = vadd.f32 %v42, %v43
    %45 = vst [vmem:[#allocation5] sm:$0xff] %v44
    // Predicated region
    $region14: #{tpu_custom_call.1} parent=1 // pred_check
      _
    $region15: #{tpu_custom_call.1} parent=1 // pred_check_branch
      %47 = sbr.rel (0) target = $region17
    $region16: #{tpu_custom_call.1} parent=1 // pred_region
      %49 = vsyncadd [#allocation4], 0
      %s51 = sshll.u32 [#allocation5], 4
      %s52 = int_to_ptr.vmem [resolvable:$true] %s51
      %s53 = sshll.u32 %s1, 4
      %s54 = int_to_ptr.hbm [resolvable:$true] %s53
      %56 = dma.vmem_to_hbm [thread:$0]  %s52, 128, %s54, [#allocation4]
    $region17: #{tpu_custom_call.1} parent=1 // pred_fallthru
      _
    // Predicated region
    $region18: #{tpu_custom_call.1} parent=1 // pred_check
      _
    $region19: #{tpu_custom_call.1} parent=1 // pred_check_branch
      %58 = sbr.rel (0) target = $region21
    $region20: #{tpu_custom_call.1} parent=1 // pred_region
      %60 = dma.done [#allocation4], 128
    $region21: #{tpu_custom_call.1} parent=1 // pred_fallthru
      _
    %61 = vsyncpa [#allocation3], 1
    %62 = vsyncpa [#allocation4], 1

</llo_original>
